<compile_context>
chip_gen: v6e
topology: v6e:2x2x1
jax: 0.10.0
libtpu: 0.0.40
codegen_flags: <defaults>
</compile_context>

<pallas_src>
import functools

import jax
import jax.numpy as jnp
from jax.experimental import pallas as pl
from jax.experimental.pallas import tpu as pltpu


def _gp_kernel(alpha_ref, tgt_ref, src_ref, w1_ref, gram_ref, b1_ref,
               out_ref, *, inv_batch):
    # alpha: (tb, 1)   tgt/src: (tb, D)   w1: (D, H) bf16
    # gram:  (H, H) f32 = (W1^T W1) * (w2^T w2)   b1: (1, H)
    # out:   (1, 1) -- accumulated across the B-tile grid axis
    @pl.when(pl.program_id(0) == 0)
    def _():
        out_ref[...] = jnp.zeros_like(out_ref)

    alpha = alpha_ref[...]                                   # (tb, 1)
    src = src_ref[...]
    x = src + alpha * (tgt_ref[...] - src)                   # (tb, D)

    w1 = w1_ref[...].astype(jnp.float32)                     # (D, H)

    # critic pre-activation; only its sign (relu' mask) matters downstream
    z = jnp.dot(x, w1, preferred_element_type=jnp.float32) + b1_ref[...]  # (tb, H)
    m = (z > 0.0).astype(jnp.float32)                        # (tb, H) 0/1 mask

    # ||(m * w2) @ W1^T||^2 per row  ==  m @ [(W1^T W1) ⊙ (w2^T w2)] @ m^T
    mg = jnp.dot(m, gram_ref[...], preferred_element_type=jnp.float32)   # (tb, H)
    sq = jnp.sum(mg * m, axis=1, keepdims=True)              # (tb, 1)
    norm = jnp.sqrt(sq)
    contrib = jnp.sum((norm - 1.0) ** 2, axis=0, keepdims=True)          # (1, 1)
    out_ref[...] += contrib * inv_batch


def gradient_penalty(alpha, target_flat, source_flat, w1_bf16, gram, b1):
    B, D = target_flat.shape
    H = w1_bf16.shape[1]
    tb = B if B <= 256 else 256                # MXU-sized B tiles at large batch
    assert B % tb == 0, "batch must tile evenly"
    grid = (B // tb,)

    kernel = functools.partial(_gp_kernel, inv_batch=1.0 / B)
    out = pl.pallas_call(
        kernel,
        out_shape=jax.ShapeDtypeStruct((1, 1), jnp.float32),
        grid=grid,
        in_specs=[
            pl.BlockSpec((tb, 1), lambda i: (i, 0)),   # alpha (per-sample)
            pl.BlockSpec((tb, D), lambda i: (i, 0)),   # target (flattened)
            pl.BlockSpec((tb, D), lambda i: (i, 0)),   # source (flattened)
            pl.BlockSpec((D, H), lambda i: (0, 0)),    # W1, bf16
            pl.BlockSpec((H, H), lambda i: (0, 0)),    # G' = (W1^T W1)⊙(w2^T w2)
            pl.BlockSpec((1, H), lambda i: (0, 0)),    # b1
        ],
        out_specs=pl.BlockSpec((1, 1), lambda i: (0, 0)),
        compiler_params=pltpu.CompilerParams(
            dimension_semantics=("arbitrary",)),       # reduction into 1 scalar
    )(alpha, target_flat, source_flat, w1_bf16, gram, b1)
    return out[0, 0]


if __name__ == "__main__":
    key = jax.random.PRNGKey(0)
    B, C, Hh, Ww = 2, 4, 16, 16
    D = C * Hh * Ww            # 1024
    HID = 32

    k_t, k_s, k_a, k_w1, k_b1, k_w2 = jax.random.split(key, 6)
    target = jax.random.normal(k_t, (B, C, Hh, Ww), dtype=jnp.float32)
    source = jax.random.normal(k_s, (B, C, Hh, Ww), dtype=jnp.float32)
    alpha = jax.random.uniform(k_a, (B, 1), dtype=jnp.float32)  # per-sample U[0,1)

    # deterministic critic parameters (synthetic, not a checkpoint)
    w1_bf16 = (jax.random.normal(k_w1, (D, HID), dtype=jnp.float32)
               * (1.0 / jnp.sqrt(D))).astype(jnp.bfloat16)      # shipped as bf16
    w1_f32 = w1_bf16.astype(jnp.float32)                        # exact critic W1
    b1 = jax.random.normal(k_b1, (1, HID), dtype=jnp.float32) * 0.1
    w2 = jax.random.normal(k_w2, (1, HID), dtype=jnp.float32) * (1.0 / jnp.sqrt(HID))

    # glue computed once per critic update: w2-folded Gram matrix
    gram = (jnp.dot(w1_f32.T, w1_f32, precision=jax.lax.Precision.HIGHEST)
            * jnp.dot(w2.T, w2, precision=jax.lax.Precision.HIGHEST))   # (H, H)

    # glue: NCHW -> (B, D) flatten (matches torch .view(B, -1) semantics)
    target_flat = target.reshape(B, D)
    source_flat = source.reshape(B, D)

    out = gradient_penalty(alpha, target_flat, source_flat, w1_bf16, gram, b1)
    jax.block_until_ready(out)

    # sanity check against pure-JAX autodiff reference (same bf16-rounded W1)
    def critic(x_flat):
        z = jnp.dot(x_flat, w1_f32, precision=jax.lax.Precision.HIGHEST) + b1
        return jnp.sum(jax.nn.relu(z) * w2, axis=1)

    x_int = source_flat + alpha * (target_flat - source_flat)
    grad_ref = jax.grad(lambda x: jnp.sum(critic(x)))(x_int)
    norm_ref = jnp.linalg.norm(grad_ref.reshape(B, -1), axis=1)
    ref = jnp.mean((norm_ref - 1.0) ** 2)
    assert jnp.allclose(out, ref, rtol=1e-3, atol=1e-5), (out, ref)

    # TODO(synk): no custom_vjp — penalty is forward-only; training WGAN-GP would
    # need a backward kernel / defvjp w.r.t. the critic parameters.
    print("KERNEL_OK")
</pallas_src>

<mosaic_0001>
module attributes {stable_mosaic.version = 11 : i64} {
  func.func @_gp_kernel(%arg0: i32, %arg1: memref<2x1xf32, #tpu.memory_space<vmem>>, %arg2: memref<2x1024xf32, #tpu.memory_space<vmem>>, %arg3: memref<2x1024xf32, #tpu.memory_space<vmem>>, %arg4: memref<1024x32xbf16, #tpu.memory_space<vmem>>, %arg5: memref<32x32xf32, #tpu.memory_space<vmem>>, %arg6: memref<1x32xf32, #tpu.memory_space<vmem>>, %arg7: memref<1x1xf32, #tpu.memory_space<vmem>>) attributes {dimension_semantics = [#tpu.dimension_semantics<arbitrary>], iteration_bounds = array<i64: 1>, scalar_prefetch = 0 : i64, scratch_operands = 0 : i64, tpu.core_type = #tpu.core_type<tc>, window_params = [{transform_indices = @transform_0, window_bounds = array<i64: 2, 1>}, {transform_indices = @transform_1, window_bounds = array<i64: 2, 1024>}, {transform_indices = @transform_2, window_bounds = array<i64: 2, 1024>}, {pipeline_mode = #tpu.pipeline_mode<synchronous>, transform_indices = @transform_3, window_bounds = array<i64: 1024, 32>}, {pipeline_mode = #tpu.pipeline_mode<synchronous>, transform_indices = @transform_4, window_bounds = array<i64: 32, 32>}, {pipeline_mode = #tpu.pipeline_mode<synchronous>, transform_indices = @transform_5, window_bounds = array<i64: 1, 32>}, {pipeline_mode = #tpu.pipeline_mode<synchronous>, transform_indices = @transform_6, window_bounds = array<i64: 1, 1>}]} {
    %c0_i32 = arith.constant 0 : i32
    %0 = arith.cmpi eq, %arg0, %c0_i32 : i32
    %1 = arith.extui %0 : i1 to i32
    %c0_i32_0 = arith.constant 0 : i32
    %2 = arith.cmpi ne, %1, %c0_i32_0 : i32
    scf.if %2 {
      %cst_22 = arith.constant 0.000000e+00 : f32
      %36 = vector.broadcast %cst_22 : f32 to vector<1x1xf32>
      %c0_23 = arith.constant 0 : index
      %c0_24 = arith.constant 0 : index
      %37 = vector.load %arg7[%c0_23, %c0_24] : memref<1x1xf32, #tpu.memory_space<vmem>>, vector<1x1xf32>
      tpu.vector_store %arg7[%c0_23, %c0_24], %36 {strides = array<i32>} : memref<1x1xf32, #tpu.memory_space<vmem>>, vector<1x1xf32>,
    } else {
    }
    %c0 = arith.constant 0 : index
    %c0_1 = arith.constant 0 : index
    %3 = vector.load %arg1[%c0, %c0_1] : memref<2x1xf32, #tpu.memory_space<vmem>>, vector<2x1xf32>
    %c0_2 = arith.constant 0 : index
    %c0_3 = arith.constant 0 : index
    %4 = vector.load %arg3[%c0_2, %c0_3] : memref<2x1024xf32, #tpu.memory_space<vmem>>, vector<2x1024xf32>
    %c0_4 = arith.constant 0 : index
    %c0_5 = arith.constant 0 : index
    %5 = vector.load %arg2[%c0_4, %c0_5] : memref<2x1024xf32, #tpu.memory_space<vmem>>, vector<2x1024xf32>
    %6 = arith.subf %5, %4 : vector<2x1024xf32>
    %7 = vector.broadcast %3 : vector<2x1xf32> to vector<2x1024xf32>
    %8 = arith.mulf %7, %6 : vector<2x1024xf32>
    %9 = arith.addf %4, %8 : vector<2x1024xf32>
    %c0_6 = arith.constant 0 : index
    %c0_7 = arith.constant 0 : index
    %10 = vector.load %arg4[%c0_6, %c0_7] : memref<1024x32xbf16, #tpu.memory_space<vmem>>, vector<1024x32xbf16>
    %11 = arith.extf %10 : vector<1024x32xbf16> to vector<1024x32xf32>
    %cst = arith.constant dense<0.000000e+00> : vector<2x32xf32>
    %12 = tpu.matmul %9, %11, %cst {dimension_numbers = #tpu.dot_dimension_numbers<[1], [0], [0], [1], [0, 0, 1, 1], [], []>} : vector<2x1024xf32>, vector<1024x32xf32>, vector<2x32xf32> -> vector<2x32xf32>
    %c0_8 = arith.constant 0 : index
    %c0_9 = arith.constant 0 : index
    %13 = vector.load %arg6[%c0_8, %c0_9] : memref<1x32xf32, #tpu.memory_space<vmem>>, vector<1x32xf32>
    %14 = vector.broadcast %13 : vector<1x32xf32> to vector<2x32xf32>
    %15 = arith.addf %12, %14 : vector<2x32xf32>
    %cst_10 = arith.constant 0.000000e+00 : f32
    %16 = vector.broadcast %cst_10 : f32 to vector<2x32xf32>
    %17 = arith.cmpf ogt, %15, %16 : vector<2x32xf32>
    %18 = arith.extui %17 : vector<2x32xi1> to vector<2x32xi32>
    %19 = arith.sitofp %18 : vector<2x32xi32> to vector<2x32xf32>
    %c0_11 = arith.constant 0 : index
    %c0_12 = arith.constant 0 : index
    %20 = vector.load %arg5[%c0_11, %c0_12] : memref<32x32xf32, #tpu.memory_space<vmem>>, vector<32x32xf32>
    %cst_13 = arith.constant dense<0.000000e+00> : vector<2x32xf32>
    %21 = tpu.matmul %19, %20, %cst_13 {dimension_numbers = #tpu.dot_dimension_numbers<[1], [0], [0], [1], [0, 0, 1, 1], [], []>} : vector<2x32xf32>, vector<32x32xf32>, vector<2x32xf32> -> vector<2x32xf32>
    %22 = arith.mulf %21, %19 : vector<2x32xf32>
    %cst_14 = arith.constant dense<0.000000e+00> : vector<2xf32>
    %23 = vector.multi_reduction <add>, %22, %cst_14 [1] : vector<2x32xf32> to vector<2xf32>
    %24 = vector.shape_cast %23 : vector<2xf32> to vector<2x1xf32>
    %25 = math.sqrt %24 : vector<2x1xf32>
    %cst_15 = arith.constant 1.000000e+00 : f32
    %26 = vector.broadcast %cst_15 : f32 to vector<2x1xf32>
    %27 = arith.subf %25, %26 : vector<2x1xf32>
    %28 = arith.mulf %27, %27 : vector<2x1xf32>
    %cst_16 = arith.constant dense<0.000000e+00> : vector<1xf32>
    %29 = vector.multi_reduction <add>, %28, %cst_16 [0] : vector<2x1xf32> to vector<1xf32>
    %30 = vector.shape_cast %29 : vector<1xf32> to vector<1x1xf32>
    %c0_17 = arith.constant 0 : index
    %c0_18 = arith.constant 0 : index
    %31 = vector.load %arg7[%c0_17, %c0_18] : memref<1x1xf32, #tpu.memory_space<vmem>>, vector<1x1xf32>
    %cst_19 = arith.constant 5.000000e-01 : f32
    %32 = vector.broadcast %cst_19 : f32 to vector<1x1xf32>
    %33 = arith.mulf %30, %32 : vector<1x1xf32>
    %34 = arith.addf %31, %33 : vector<1x1xf32>
    %c0_20 = arith.constant 0 : index
    %c0_21 = arith.constant 0 : index
    %35 = vector.load %arg7[%c0_20, %c0_21] : memref<1x1xf32, #tpu.memory_space<vmem>>, vector<1x1xf32>
    tpu.vector_store %arg7[%c0_20, %c0_21], %34 {strides = array<i32>} : memref<1x1xf32, #tpu.memory_space<vmem>>, vector<1x1xf32>,
    return
  }
  func.func @transform_0(%arg0: i32) -> (i32, i32) {
    %c0_i32 = arith.constant 0 : i32
    %c0_i32_0 = arith.constant 0 : i32
    return %arg0, %c0_i32 : i32, i32
  }
  func.func @transform_1(%arg0: i32) -> (i32, i32) {
    %c0_i32 = arith.constant 0 : i32
    %c0_i32_0 = arith.constant 0 : i32
    return %arg0, %c0_i32 : i32, i32
  }
  func.func @transform_2(%arg0: i32) -> (i32, i32) {
    %c0_i32 = arith.constant 0 : i32
    %c0_i32_0 = arith.constant 0 : i32
    return %arg0, %c0_i32 : i32, i32
  }
  func.func @transform_3(%arg0: i32) -> (i32, i32) {
    %c0_i32 = arith.constant 0 : i32
    %c0_i32_0 = arith.constant 0 : i32
    %c0_i32_1 = arith.constant 0 : i32
    return %c0_i32, %c0_i32_0 : i32, i32
  }
  func.func @transform_4(%arg0: i32) -> (i32, i32) {
    %c0_i32 = arith.constant 0 : i32
    %c0_i32_0 = arith.constant 0 : i32
    %c0_i32_1 = arith.constant 0 : i32
    return %c0_i32, %c0_i32_0 : i32, i32
  }
  func.func @transform_5(%arg0: i32) -> (i32, i32) {
    %c0_i32 = arith.constant 0 : i32
    %c0_i32_0 = arith.constant 0 : i32
    %c0_i32_1 = arith.constant 0 : i32
    return %c0_i32, %c0_i32_0 : i32, i32
  }
  func.func @transform_6(%arg0: i32) -> (i32, i32) {
    %c0_i32 = arith.constant 0 : i32
    %c0_i32_0 = arith.constant 0 : i32
    %c0_i32_1 = arith.constant 0 : i32
    return %c0_i32, %c0_i32_0 : i32, i32
  }
}

</mosaic_0001>

<llo_original>
// kernel: tpu_custom_call.1
$region0: #{tpu_custom_call.1}
  #allocation0 [shape = 'u32[]', space=smem, size = 0x4, offset = 0x4, fixed_abs, tag = 'smem constant byte address 0x4 - core index']
  #allocation1 [shape = 'u32[144,128]{1,0:T(1,128)}', space=vmem, size = 0x12000, scoped, tag = 'internal scratch']
  %s0 = inlined_call_operand.vmem [shape: f32[2,1], index: 0, kind: input, shape index: {}]
  %s1 = inlined_call_operand.vmem [shape: f32[2,1024], index: 1, kind: input, shape index: {}]
  %s2 = inlined_call_operand.vmem [shape: f32[2,1024], index: 2, kind: input, shape index: {}]
  %s3 = inlined_call_operand.vmem [shape: bf16[1024,32], index: 3, kind: input, shape index: {}]
  %s4 = inlined_call_operand.vmem [shape: f32[32,32], index: 4, kind: input, shape index: {}]
  %s5 = inlined_call_operand.vmem [shape: f32[1,32], index: 5, kind: input, shape index: {}]
  %s6 = inlined_call_operand.hbm [shape: f32[1,1], index: 6, kind: output, shape index: {}]
  %s7 = sld [smem:[#allocation0]]
  $region38: #{tpu_custom_call.1} parent=0
    _
  %s9 = ssub.s32 1, %s7
  %s10 = scalar_select 0, %s9, %s7
  $region1: #{tpu_custom_call.1} parent=0
    #allocation2 [shape = 'u8[512]{0}', space=vmem, size = 0x400, scoped, tag = 'output window, operand 0, single buffered']
    #allocation3 [shape = 's32[1]{0}', space=sflag, size = 0x4, scoped, tag = 'scoped memory for tpu_custom_call.1']
    %11 = vsyncpa [#allocation3], 0
    // Predicated region
    $region2: #{tpu_custom_call.1} parent=1 // pred_check
      _
    $region3: #{tpu_custom_call.1} parent=1 // pred_check_branch
      %13 = sbr.rel (0) target = $region5
    $region4: #{tpu_custom_call.1} parent=1 // pred_region
      _
    $region5: #{tpu_custom_call.1} parent=1 // pred_fallthru
      _
    // Predicated region
    $region6: #{tpu_custom_call.1} parent=1 // pred_check
      _
    $region7: #{tpu_custom_call.1} parent=1 // pred_check_branch
      %15 = sbr.rel (0) target = $region9
    $region8: #{tpu_custom_call.1} parent=1 // pred_region
      _
    $region9: #{tpu_custom_call.1} parent=1 // pred_fallthru
      _
    // Predicated region
    $region10: #{tpu_custom_call.1} parent=1 // pred_check
      _
    $region11: #{tpu_custom_call.1} parent=1 // pred_check_branch
      %17 = sbr.rel (0) target = $region13
    $region12: #{tpu_custom_call.1} parent=1 // pred_region
      _
    $region13: #{tpu_custom_call.1} parent=1 // pred_fallthru
      _
    // Predicated region
    $region14: #{tpu_custom_call.1} parent=1 // pred_check
      _
    $region15: #{tpu_custom_call.1} parent=1 // pred_check_branch
      %19 = sbr.rel (0) target = $region17
    $region16: #{tpu_custom_call.1} parent=1 // pred_region
      _
    $region17: #{tpu_custom_call.1} parent=1 // pred_fallthru
      _
    // Predicated region
    $region18: #{tpu_custom_call.1} parent=1 // pred_check
      _
    $region19: #{tpu_custom_call.1} parent=1 // pred_check_branch
      %21 = sbr.rel (0) target = $region21
    $region20: #{tpu_custom_call.1} parent=1 // pred_region
      _
    $region21: #{tpu_custom_call.1} parent=1 // pred_fallthru
      _
    // Predicated region
    $region22: #{tpu_custom_call.1} parent=1 // pred_check
      _
    $region23: #{tpu_custom_call.1} parent=1 // pred_check_branch
      %23 = sbr.rel (0) target = $region25
    $region24: #{tpu_custom_call.1} parent=1 // pred_region
      _
    $region25: #{tpu_custom_call.1} parent=1 // pred_fallthru
      _
    %p24 = scmp.eq.s32.totalorder 0, 0
    // Predicated region
    $region26: #{tpu_custom_call.1} parent=1 // pred_check
      %p25 = pneg %p24
    $region27: #{tpu_custom_call.1} parent=1 // pred_check_branch
      %27 = sbr.rel (%p25) target = $region29
    $region28: #{tpu_custom_call.1} parent=1 // pred_region
      %vm28 = vcmask 0
      %29 = vst.msk [vmem:[#allocation2] sm:$0x1] %vm28, 0.0
    $region29: #{tpu_custom_call.1} parent=1 // pred_fallthru
      _
    %v30 = vld [vmem:[%s0] sm:$0x3]
    %v31 = vld [vmem:[%s2] sm:$0xff]
    %v32 = vld [vmem:[%s2 + $0x8] sm:$0xff]
    %v33 = vld [vmem:[%s1] sm:$0xff]
    %v34 = vld [vmem:[%s1 + $0x8] sm:$0xff]
    %v35 = vsub.f32 %v33, %v31
    %v36 = vsub.f32 %v34, %v32
    %38 = vset.pattern.permute.xlu0 0
    %39 = vperm.xlu0 %38, %v30
    %v40 = vpop.permute.xlu0 %39
    %v44 = vcombine.high %v35, %v35
    %v46 = vunpack.c.l.s4 1983009808
    %v47 = vunpack.c.0.s8 %v46
    %v48 = vlaneseq
    %v49 = vshrl.u32 %v48, 7
    %v50 = vsub.s32 %v47, %v49
    %v51 = vrot.slane %v35, %v50
    %v53 = vunpack.c.l.s4 1983009808
    %v54 = vunpack.c.0.s8 %v53
    %v55 = vlaneseq
    %v56 = vshrl.u32 %v55, 7
    %v57 = vsub.s32 %v54, %v56
    %v58 = vrot.slane %v44, %v57
    %v59 = vcombine.high %v51, %v51
    %v60 = vcombine.high %v58, %v58
    %v61 = vcombine.high %v36, %v36
    %v63 = vunpack.c.l.s4 1983009808
    %v64 = vunpack.c.0.s8 %v63
    %v65 = vlaneseq
    %v66 = vshrl.u32 %v65, 7
    %v67 = vsub.s32 %v64, %v66
    %v68 = vrot.slane %v36, %v67
    %v70 = vunpack.c.l.s4 1983009808
    %v71 = vunpack.c.0.s8 %v70
    %v72 = vlaneseq
    %v73 = vshrl.u32 %v72, 7
    %v74 = vsub.s32 %v71, %v73
    %v75 = vrot.slane %v61, %v74
    %v76 = vcombine.high %v68, %v68
    %v77 = vcombine.high %v75, %v75
    %v86 = vmul.f32 %v40, %v51
    %v87 = vmul.f32 %v40, %v59
    %v88 = vmul.f32 %v40, %v58
    %v89 = vmul.f32 %v40, %v60
    %v90 = vmul.f32 %v40, %v68
    %v91 = vmul.f32 %v40, %v76
    %v92 = vmul.f32 %v40, %v75
    %v93 = vmul.f32 %v40, %v77
    %v102 = vcombine.low %v86, %v87
    %v103 = vcombine.low %v88, %v89
    %v105 = vunpack.c.l.s4 1983009808
    %v106 = vunpack.c.0.s8 %v105
    %v107 = vlaneseq
    %v108 = vshrl.u32 %v107, 7
    %v109 = vsub.s32 %v106, %v108
    %v110 = vrot.slane %v102, %v109
    %v112 = vunpack.c.l.s4 1983009808
    %v113 = vunpack.c.0.s8 %v112
    %v114 = vlaneseq
    %v115 = vshrl.u32 %v114, 7
    %v116 = vsub.s32 %v113, %v115
    %v117 = vrot.slane %v103, %v116
    %v118 = vcombine.low %v110, %v117
    %v119 = vcombine.low %v90, %v91
    %v120 = vcombine.low %v92, %v93
    %v122 = vunpack.c.l.s4 1983009808
    %v123 = vunpack.c.0.s8 %v122
    %v124 = vlaneseq
    %v125 = vshrl.u32 %v124, 7
    %v126 = vsub.s32 %v123, %v125
    %v127 = vrot.slane %v119, %v126
    %v129 = vunpack.c.l.s4 1983009808
    %v130 = vunpack.c.0.s8 %v129
    %v131 = vlaneseq
    %v132 = vshrl.u32 %v131, 7
    %v133 = vsub.s32 %v130, %v132
    %v134 = vrot.slane %v120, %v133
    %v135 = vcombine.low %v127, %v134
    %v138 = vadd.f32 %v31, %v118
    %v139 = vadd.f32 %v32, %v135
    %v140 = vld [vmem:[%s3] sm:$0xf]
    %v141 = vld [vmem:[%s3 + $0x4] sm:$0xf]
    %v142 = vld [vmem:[%s3 + $0x8] sm:$0xf]
    %v143 = vld [vmem:[%s3 + $0xc] sm:$0xf]
    %v144 = vld [vmem:[%s3 + $0x10] sm:$0xf]
    %v145 = vld [vmem:[%s3 + $0x14] sm:$0xf]
    %v146 = vld [vmem:[%s3 + $0x18] sm:$0xf]
    %v147 = vld [vmem:[%s3 + $0x1c] sm:$0xf]
    %v148 = vld [vmem:[%s3 + $0x20] sm:$0xf]
    %v149 = vld [vmem:[%s3 + $0x24] sm:$0xf]
    %v150 = vld [vmem:[%s3 + $0x28] sm:$0xf]
    %v151 = vld [vmem:[%s3 + $0x2c] sm:$0xf]
    %v152 = vld [vmem:[%s3 + $0x30] sm:$0xf]
    %v153 = vld [vmem:[%s3 + $0x34] sm:$0xf]
    %v154 = vld [vmem:[%s3 + $0x38] sm:$0xf]
    %v155 = vld [vmem:[%s3 + $0x3c] sm:$0xf]
    %v156 = vld [vmem:[%s3 + $0x40] sm:$0xf]
    %v157 = vld [vmem:[%s3 + $0x44] sm:$0xf]
    %v158 = vld [vmem:[%s3 + $0x48] sm:$0xf]
    %v159 = vld [vmem:[%s3 + $0x4c] sm:$0xf]
    %v160 = vld [vmem:[%s3 + $0x50] sm:$0xf]
    %v161 = vld [vmem:[%s3 + $0x54] sm:$0xf]
    %v162 = vld [vmem:[%s3 + $0x58] sm:$0xf]
    %v163 = vld [vmem:[%s3 + $0x5c] sm:$0xf]
    %v164 = vld [vmem:[%s3 + $0x60] sm:$0xf]
    %v165 = vld [vmem:[%s3 + $0x64] sm:$0xf]
    %v166 = vld [vmem:[%s3 + $0x68] sm:$0xf]
    %v167 = vld [vmem:[%s3 + $0x6c] sm:$0xf]
    %v168 = vld [vmem:[%s3 + $0x70] sm:$0xf]
    %v169 = vld [vmem:[%s3 + $0x74] sm:$0xf]
    %v170 = vld [vmem:[%s3 + $0x78] sm:$0xf]
    %v171 = vld [vmem:[%s3 + $0x7c] sm:$0xf]
    %v172 = vld [vmem:[%s3 + $0x80] sm:$0xf]
    %v173 = vld [vmem:[%s3 + $0x84] sm:$0xf]
    %v174 = vld [vmem:[%s3 + $0x88] sm:$0xf]
    %v175 = vld [vmem:[%s3 + $0x8c] sm:$0xf]
    %v176 = vld [vmem:[%s3 + $0x90] sm:$0xf]
    %v177 = vld [vmem:[%s3 + $0x94] sm:$0xf]
    %v178 = vld [vmem:[%s3 + $0x98] sm:$0xf]
    %v179 = vld [vmem:[%s3 + $0x9c] sm:$0xf]
    %v180 = vld [vmem:[%s3 + $0xa0] sm:$0xf]
    %v181 = vld [vmem:[%s3 + $0xa4] sm:$0xf]
    %v182 = vld [vmem:[%s3 + $0xa8] sm:$0xf]
    %v183 = vld [vmem:[%s3 + $0xac] sm:$0xf]
    %v184 = vld [vmem:[%s3 + $0xb0] sm:$0xf]
    %v185 = vld [vmem:[%s3 + $0xb4] sm:$0xf]
    %v186 = vld [vmem:[%s3 + $0xb8] sm:$0xf]
    %v187 = vld [vmem:[%s3 + $0xbc] sm:$0xf]
    %v188 = vld [vmem:[%s3 + $0xc0] sm:$0xf]
    %v189 = vld [vmem:[%s3 + $0xc4] sm:$0xf]
    %v190 = vld [vmem:[%s3 + $0xc8] sm:$0xf]
    %v191 = vld [vmem:[%s3 + $0xcc] sm:$0xf]
    %v192 = vld [vmem:[%s3 + $0xd0] sm:$0xf]
    %v193 = vld [vmem:[%s3 + $0xd4] sm:$0xf]
    %v194 = vld [vmem:[%s3 + $0xd8] sm:$0xf]
    %v195 = vld [vmem:[%s3 + $0xdc] sm:$0xf]
    %v196 = vld [vmem:[%s3 + $0xe0] sm:$0xf]
    %v197 = vld [vmem:[%s3 + $0xe4] sm:$0xf]
    %v198 = vld [vmem:[%s3 + $0xe8] sm:$0xf]
    %v199 = vld [vmem:[%s3 + $0xec] sm:$0xf]
    %v200 = vld [vmem:[%s3 + $0xf0] sm:$0xf]
    %v201 = vld [vmem:[%s3 + $0xf4] sm:$0xf]
    %v202 = vld [vmem:[%s3 + $0xf8] sm:$0xf]
    %v203 = vld [vmem:[%s3 + $0xfc] sm:$0xf]
    %v204 = vld [vmem:[%s3 + $0x100] sm:$0xf]
    %v205 = vld [vmem:[%s3 + $0x104] sm:$0xf]
    %v206 = vld [vmem:[%s3 + $0x108] sm:$0xf]
    %v207 = vld [vmem:[%s3 + $0x10c] sm:$0xf]
    %v208 = vld [vmem:[%s3 + $0x110] sm:$0xf]
    %v209 = vld [vmem:[%s3 + $0x114] sm:$0xf]
    %v210 = vld [vmem:[%s3 + $0x118] sm:$0xf]
    %v211 = vld [vmem:[%s3 + $0x11c] sm:$0xf]
    %v212 = vld [vmem:[%s3 + $0x120] sm:$0xf]
    %v213 = vld [vmem:[%s3 + $0x124] sm:$0xf]
    %v214 = vld [vmem:[%s3 + $0x128] sm:$0xf]
    %v215 = vld [vmem:[%s3 + $0x12c] sm:$0xf]
    %v216 = vld [vmem:[%s3 + $0x130] sm:$0xf]
    %v217 = vld [vmem:[%s3 + $0x134] sm:$0xf]
    %v218 = vld [vmem:[%s3 + $0x138] sm:$0xf]
    %v219 = vld [vmem:[%s3 + $0x13c] sm:$0xf]
    %v220 = vld [vmem:[%s3 + $0x140] sm:$0xf]
    %v221 = vld [vmem:[%s3 + $0x144] sm:$0xf]
    %v222 = vld [vmem:[%s3 + $0x148] sm:$0xf]
    %v223 = vld [vmem:[%s3 + $0x14c] sm:$0xf]
    %v224 = vld [vmem:[%s3 + $0x150] sm:$0xf]
    %v225 = vld [vmem:[%s3 + $0x154] sm:$0xf]
    %v226 = vld [vmem:[%s3 + $0x158] sm:$0xf]
    %v227 = vld [vmem:[%s3 + $0x15c] sm:$0xf]
    %v228 = vld [vmem:[%s3 + $0x160] sm:$0xf]
    %v229 = vld [vmem:[%s3 + $0x164] sm:$0xf]
    %v230 = vld [vmem:[%s3 + $0x168] sm:$0xf]
    %v231 = vld [vmem:[%s3 + $0x16c] sm:$0xf]
    %v232 = vld [vmem:[%s3 + $0x170] sm:$0xf]
    %v233 = vld [vmem:[%s3 + $0x174] sm:$0xf]
    %v234 = vld [vmem:[%s3 + $0x178] sm:$0xf]
    %v235 = vld [vmem:[%s3 + $0x17c] sm:$0xf]
    %v236 = vld [vmem:[%s3 + $0x180] sm:$0xf]
    %v237 = vld [vmem:[%s3 + $0x184] sm:$0xf]
    %v238 = vld [vmem:[%s3 + $0x188] sm:$0xf]
    %v239 = vld [vmem:[%s3 + $0x18c] sm:$0xf]
    %v240 = vld [vmem:[%s3 + $0x190] sm:$0xf]
    %v241 = vld [vmem:[%s3 + $0x194] sm:$0xf]
    %v242 = vld [vmem:[%s3 + $0x198] sm:$0xf]
    %v243 = vld [vmem:[%s3 + $0x19c] sm:$0xf]
    %v244 = vld [vmem:[%s3 + $0x1a0] sm:$0xf]
    %v245 = vld [vmem:[%s3 + $0x1a4] sm:$0xf]
    %v246 = vld [vmem:[%s3 + $0x1a8] sm:$0xf]
    %v247 = vld [vmem:[%s3 + $0x1ac] sm:$0xf]
    %v248 = vld [vmem:[%s3 + $0x1b0] sm:$0xf]
    %v249 = vld [vmem:[%s3 + $0x1b4] sm:$0xf]
    %v250 = vld [vmem:[%s3 + $0x1b8] sm:$0xf]
    %v251 = vld [vmem:[%s3 + $0x1bc] sm:$0xf]
    %v252 = vld [vmem:[%s3 + $0x1c0] sm:$0xf]
    %v253 = vld [vmem:[%s3 + $0x1c4] sm:$0xf]
    %v254 = vld [vmem:[%s3 + $0x1c8] sm:$0xf]
    %v255 = vld [vmem:[%s3 + $0x1cc] sm:$0xf]
    %v256 = vld [vmem:[%s3 + $0x1d0] sm:$0xf]
    %v257 = vld [vmem:[%s3 + $0x1d4] sm:$0xf]
    %v258 = vld [vmem:[%s3 + $0x1d8] sm:$0xf]
    %v259 = vld [vmem:[%s3 + $0x1dc] sm:$0xf]
    %v260 = vld [vmem:[%s3 + $0x1e0] sm:$0xf]
    %v261 = vld [vmem:[%s3 + $0x1e4] sm:$0xf]
    %v262 = vld [vmem:[%s3 + $0x1e8] sm:$0xf]
    %v263 = vld [vmem:[%s3 + $0x1ec] sm:$0xf]
    %v264 = vld [vmem:[%s3 + $0x1f0] sm:$0xf]
    %v265 = vld [vmem:[%s3 + $0x1f4] sm:$0xf]
    %v266 = vld [vmem:[%s3 + $0x1f8] sm:$0xf]
    %v267 = vld [vmem:[%s3 + $0x1fc] sm:$0xf]
    %v268 = vunpack.c.l.bf16 %v140
    %v269 = vunpack.c.l.bf16 %v141
    %v270 = vunpack.c.l.bf16 %v142
    %v271 = vunpack.c.l.bf16 %v143
    %v272 = vunpack.c.l.bf16 %v144
    %v273 = vunpack.c.l.bf16 %v145
    %v274 = vunpack.c.l.bf16 %v146
    %v275 = vunpack.c.l.bf16 %v147
    %v276 = vunpack.c.l.bf16 %v148
    %v277 = vunpack.c.l.bf16 %v149
    %v278 = vunpack.c.l.bf16 %v150
    %v279 = vunpack.c.l.bf16 %v151
    %v280 = vunpack.c.l.bf16 %v152
    %v281 = vunpack.c.l.bf16 %v153
    %v282 = vunpack.c.l.bf16 %v154
    %v283 = vunpack.c.l.bf16 %v155
    %v284 = vunpack.c.l.bf16 %v156
    %v285 = vunpack.c.l.bf16 %v157
    %v286 = vunpack.c.l.bf16 %v158
    %v287 = vunpack.c.l.bf16 %v159
    %v288 = vunpack.c.l.bf16 %v160
    %v289 = vunpack.c.l.bf16 %v161
    %v290 = vunpack.c.l.bf16 %v162
    %v291 = vunpack.c.l.bf16 %v163
    %v292 = vunpack.c.l.bf16 %v164
    %v293 = vunpack.c.l.bf16 %v165
    %v294 = vunpack.c.l.bf16 %v166
    %v295 = vunpack.c.l.bf16 %v167
    %v296 = vunpack.c.l.bf16 %v168
    %v297 = vunpack.c.l.bf16 %v169
    %v298 = vunpack.c.l.bf16 %v170
    %v299 = vunpack.c.l.bf16 %v171
    %v300 = vunpack.c.l.bf16 %v172
    %v301 = vunpack.c.l.bf16 %v173
    %v302 = vunpack.c.l.bf16 %v174
    %v303 = vunpack.c.l.bf16 %v175
    %v304 = vunpack.c.l.bf16 %v176
    %v305 = vunpack.c.l.bf16 %v177
    %v306 = vunpack.c.l.bf16 %v178
    %v307 = vunpack.c.l.bf16 %v179
    %v308 = vunpack.c.l.bf16 %v180
    %v309 = vunpack.c.l.bf16 %v181
    %v310 = vunpack.c.l.bf16 %v182
    %v311 = vunpack.c.l.bf16 %v183
    %v312 = vunpack.c.l.bf16 %v184
    %v313 = vunpack.c.l.bf16 %v185
    %v314 = vunpack.c.l.bf16 %v186
    %v315 = vunpack.c.l.bf16 %v187
    %v316 = vunpack.c.l.bf16 %v188
    %v317 = vunpack.c.l.bf16 %v189
    %v318 = vunpack.c.l.bf16 %v190
    %v319 = vunpack.c.l.bf16 %v191
    %v320 = vunpack.c.l.bf16 %v192
    %v321 = vunpack.c.l.bf16 %v193
    %v322 = vunpack.c.l.bf16 %v194
    %v323 = vunpack.c.l.bf16 %v195
    %v324 = vunpack.c.l.bf16 %v196
    %v325 = vunpack.c.l.bf16 %v197
    %v326 = vunpack.c.l.bf16 %v198
    %v327 = vunpack.c.l.bf16 %v199
    %v328 = vunpack.c.l.bf16 %v200
    %v329 = vunpack.c.l.bf16 %v201
    %v330 = vunpack.c.l.bf16 %v202
    %v331 = vunpack.c.l.bf16 %v203
    %v332 = vunpack.c.l.bf16 %v204
    %v333 = vunpack.c.l.bf16 %v205
    %v334 = vunpack.c.l.bf16 %v206
    %v335 = vunpack.c.l.bf16 %v207
    %v336 = vunpack.c.l.bf16 %v208
    %v337 = vunpack.c.l.bf16 %v209
    %v338 = vunpack.c.l.bf16 %v210
    %v339 = vunpack.c.l.bf16 %v211
    %v340 = vunpack.c.l.bf16 %v212
    %v341 = vunpack.c.l.bf16 %v213
    %v342 = vunpack.c.l.bf16 %v214
    %v343 = vunpack.c.l.bf16 %v215
    %v344 = vunpack.c.l.bf16 %v216
    %v345 = vunpack.c.l.bf16 %v217
    %v346 = vunpack.c.l.bf16 %v218
    %v347 = vunpack.c.l.bf16 %v219
    %v348 = vunpack.c.l.bf16 %v220
    %v349 = vunpack.c.l.bf16 %v221
    %v350 = vunpack.c.l.bf16 %v222
    %v351 = vunpack.c.l.bf16 %v223
    %v352 = vunpack.c.l.bf16 %v224
    %v353 = vunpack.c.l.bf16 %v225
    %v354 = vunpack.c.l.bf16 %v226
    %v355 = vunpack.c.l.bf16 %v227
    %v356 = vunpack.c.l.bf16 %v228
    %v357 = vunpack.c.l.bf16 %v229
    %v358 = vunpack.c.l.bf16 %v230
    %v359 = vunpack.c.l.bf16 %v231
    %v360 = vunpack.c.l.bf16 %v232
    %v361 = vunpack.c.l.bf16 %v233
    %v362 = vunpack.c.l.bf16 %v234
    %v363 = vunpack.c.l.bf16 %v235
    %v364 = vunpack.c.l.bf16 %v236
    %v365 = vunpack.c.l.bf16 %v237
    %v366 = vunpack.c.l.bf16 %v238
    %v367 = vunpack.c.l.bf16 %v239
    %v368 = vunpack.c.l.bf16 %v240
    %v369 = vunpack.c.l.bf16 %v241
    %v370 = vunpack.c.l.bf16 %v242
    %v371 = vunpack.c.l.bf16 %v243
    %v372 = vunpack.c.l.bf16 %v244
    %v373 = vunpack.c.l.bf16 %v245
    %v374 = vunpack.c.l.bf16 %v246
    %v375 = vunpack.c.l.bf16 %v247
    %v376 = vunpack.c.l.bf16 %v248
    %v377 = vunpack.c.l.bf16 %v249
    %v378 = vunpack.c.l.bf16 %v250
    %v379 = vunpack.c.l.bf16 %v251
    %v380 = vunpack.c.l.bf16 %v252
    %v381 = vunpack.c.l.bf16 %v253
    %v382 = vunpack.c.l.bf16 %v254
    %v383 = vunpack.c.l.bf16 %v255
    %v384 = vunpack.c.l.bf16 %v256
    %v385 = vunpack.c.l.bf16 %v257
    %v386 = vunpack.c.l.bf16 %v258
    %v387 = vunpack.c.l.bf16 %v259
    %v388 = vunpack.c.l.bf16 %v260
    %v389 = vunpack.c.l.bf16 %v261
    %v390 = vunpack.c.l.bf16 %v262
    %v391 = vunpack.c.l.bf16 %v263
    %v392 = vunpack.c.l.bf16 %v264
    %v393 = vunpack.c.l.bf16 %v265
    %v394 = vunpack.c.l.bf16 %v266
    %v395 = vunpack.c.l.bf16 %v267
    %v396 = vld [vmem:[%s5] sm:$0x1]
    %v398 = vlaneseq
    %v399 = vshrl.u32 %v398, 7
    %v400 = vsub.s32 0, %v399
    %v401 = vrot.slane %v396, %v400
    %v405 = vcombine.high %v138, %v138
    %v407 = vunpack.c.l.s4 1983009808
    %v408 = vunpack.c.0.s8 %v407
    %v409 = vlaneseq
    %v410 = vshrl.u32 %v409, 7
    %v411 = vsub.s32 %v408, %v410
    %v412 = vrot.slane %v138, %v411
    %v414 = vunpack.c.l.s4 1983009808
    %v415 = vunpack.c.0.s8 %v414
    %v416 = vlaneseq
    %v417 = vshrl.u32 %v416, 7
    %v418 = vsub.s32 %v415, %v417
    %v419 = vrot.slane %v405, %v418
    %v420 = vcombine.high %v412, %v412
    %v421 = vcombine.high %v419, %v419
    %v422 = vcombine.high %v139, %v139
    %v424 = vunpack.c.l.s4 1983009808
    %v425 = vunpack.c.0.s8 %v424
    %v426 = vlaneseq
    %v427 = vshrl.u32 %v426, 7
    %v428 = vsub.s32 %v425, %v427
    %v429 = vrot.slane %v139, %v428
    %v431 = vunpack.c.l.s4 1983009808
    %v432 = vunpack.c.0.s8 %v431
    %v433 = vlaneseq
    %v434 = vshrl.u32 %v433, 7
    %v435 = vsub.s32 %v432, %v434
    %v436 = vrot.slane %v422, %v435
    %v437 = vcombine.high %v429, %v429
    %v438 = vcombine.high %v436, %v436
    %447 = vmatprep.subr.mxu0 0.0
    %448 = vmatpush1.msra.mxu0 %v283
    %449 = vmatprep.subr.mxu0 0.0
    %450 = vmatpush1.msra.mxu0 %v282
    %451 = vmatprep.subr.mxu0 0.0
    %452 = vmatpush1.msra.mxu0 %v281
    %453 = vmatprep.subr.mxu0 0.0
    %454 = vmatpush1.msra.mxu0 %v280
    %455 = vmatprep.subr.mxu0 0.0
    %456 = vmatpush1.msra.mxu0 %v279
    %457 = vmatprep.subr.mxu0 0.0
    %458 = vmatpush1.msra.mxu0 %v278
    %459 = vmatprep.subr.mxu0 0.0
    %460 = vmatpush1.msra.mxu0 %v277
    %461 = vmatprep.subr.mxu0 0.0
    %462 = vmatpush1.msra.mxu0 %v276
    %463 = vmatprep.subr.mxu0 0.0
    %464 = vmatpush1.msra.mxu0 %v275
    %465 = vmatprep.subr.mxu0 0.0
    %466 = vmatpush1.msra.mxu0 %v274
    %467 = vmatprep.subr.mxu0 0.0
    %468 = vmatpush1.msra.mxu0 %v273
    %469 = vmatprep.subr.mxu0 0.0
    %470 = vmatpush1.msra.mxu0 %v272
    %471 = vmatprep.subr.mxu0 0.0
    %472 = vmatpush1.msra.mxu0 %v271
    %473 = vmatprep.subr.mxu0 0.0
    %474 = vmatpush1.msra.mxu0 %v270
    %475 = vmatprep.subr.mxu0 0.0
    %476 = vmatpush1.msra.mxu0 %v269
    %477 = vmatprep.subr.mxu0 0.0
    %478 = vmatpush1.msra.mxu0 %v268
    %479 = vmatprep.subr.mxu0 0.0
    %480 = vmatpush2.msra.mxu0 %v299
    %481 = vmatprep.subr.mxu0 0.0
    %482 = vmatpush2.msra.mxu0 %v298
    %483 = vmatprep.subr.mxu0 0.0
    %484 = vmatpush2.msra.mxu0 %v297
    %485 = vmatprep.subr.mxu0 0.0
    %486 = vmatpush2.msra.mxu0 %v296
    %487 = vmatprep.subr.mxu0 0.0
    %488 = vmatpush2.msra.mxu0 %v295
    %489 = vmatprep.subr.mxu0 0.0
    %490 = vmatpush2.msra.mxu0 %v294
    %491 = vmatprep.subr.mxu0 0.0
    %492 = vmatpush2.msra.mxu0 %v293
    %493 = vmatprep.subr.mxu0 0.0
    %494 = vmatpush2.msra.mxu0 %v292
    %495 = vmatprep.subr.mxu0 0.0
    %496 = vmatpush2.msra.mxu0 %v291
    %497 = vmatprep.subr.mxu0 0.0
    %498 = vmatpush2.msra.mxu0 %v290
    %499 = vmatprep.subr.mxu0 0.0
    %500 = vmatpush2.msra.mxu0 %v289
    %501 = vmatprep.subr.mxu0 0.0
    %502 = vmatpush2.msra.mxu0 %v288
    %503 = vmatprep.subr.mxu0 0.0
    %504 = vmatpush2.msra.mxu0 %v287
    %505 = vmatprep.subr.mxu0 0.0
    %506 = vmatpush2.msra.mxu0 %v286
    %507 = vmatprep.subr.mxu0 0.0
    %508 = vmatpush2.msra.mxu0 %v285
    %509 = vmatprep.subr.mxu0 0.0
    %510 = vmatpush2.msra.mxu0 %v284
    %511 = vmatprep.mubr.f32.mxu0 %v420
    %512 = vmatmul.mubr.f32.gmra.mxu0 %v412
    %v513 = vpop.f32.mrf.mxu0
    %v514 = vadd.f32 %v401, %v513
    %v515 = vpop.f32.mrf.mxu0
    %516 = vdwg.mxu0
    %517 = vmatprep.subr.mxu0 0.0
    %518 = vmatpush1.msra.mxu0 %v315
    %519 = vmatprep.subr.mxu0 0.0
    %520 = vmatpush1.msra.mxu0 %v314
    %521 = vmatprep.subr.mxu0 0.0
    %522 = vmatpush1.msra.mxu0 %v313
    %523 = vmatprep.subr.mxu0 0.0
    %524 = vmatpush1.msra.mxu0 %v312
    %525 = vmatprep.subr.mxu0 0.0
    %526 = vmatpush1.msra.mxu0 %v311
    %527 = vmatprep.subr.mxu0 0.0
    %528 = vmatpush1.msra.mxu0 %v310
    %529 = vmatprep.subr.mxu0 0.0
    %530 = vmatpush1.msra.mxu0 %v309
    %531 = vmatprep.subr.mxu0 0.0
    %532 = vmatpush1.msra.mxu0 %v308
    %533 = vmatprep.subr.mxu0 0.0
    %534 = vmatpush1.msra.mxu0 %v307
    %535 = vmatprep.subr.mxu0 0.0
    %536 = vmatpush1.msra.mxu0 %v306
    %537 = vmatprep.subr.mxu0 0.0
    %538 = vmatpush1.msra.mxu0 %v305
    %539 = vmatprep.subr.mxu0 0.0
    %540 = vmatpush1.msra.mxu0 %v304
    %541 = vmatprep.subr.mxu0 0.0
    %542 = vmatpush1.msra.mxu0 %v303
    %543 = vmatprep.subr.mxu0 0.0
    %544 = vmatpush1.msra.mxu0 %v302
    %545 = vmatprep.subr.mxu0 0.0
    %546 = vmatpush1.msra.mxu0 %v301
    %547 = vmatprep.subr.mxu0 0.0
    %548 = vmatpush1.msra.mxu0 %v300
    %549 = vmatprep.subr.mxu0 0.0
    %550 = vmatpush2.msra.mxu0 %v331
    %551 = vmatprep.subr.mxu0 0.0
    %552 = vmatpush2.msra.mxu0 %v330
    %553 = vmatprep.subr.mxu0 0.0
    %554 = vmatpush2.msra.mxu0 %v329
    %555 = vmatprep.subr.mxu0 0.0
    %556 = vmatpush2.msra.mxu0 %v328
    %557 = vmatprep.subr.mxu0 0.0
    %558 = vmatpush2.msra.mxu0 %v327
    %559 = vmatprep.subr.mxu0 0.0
    %560 = vmatpush2.msra.mxu0 %v326
    %561 = vmatprep.subr.mxu0 0.0
    %562 = vmatpush2.msra.mxu0 %v325
    %563 = vmatprep.subr.mxu0 0.0
    %564 = vmatpush2.msra.mxu0 %v324
    %565 = vmatprep.subr.mxu0 0.0
    %566 = vmatpush2.msra.mxu0 %v323
    %567 = vmatprep.subr.mxu0 0.0
    %568 = vmatpush2.msra.mxu0 %v322
    %569 = vmatprep.subr.mxu0 0.0
    %570 = vmatpush2.msra.mxu0 %v321
    %571 = vmatprep.subr.mxu0 0.0
    %572 = vmatpush2.msra.mxu0 %v320
    %573 = vmatprep.subr.mxu0 0.0
    %574 = vmatpush2.msra.mxu0 %v319
    %575 = vmatprep.subr.mxu0 0.0
    %576 = vmatpush2.msra.mxu0 %v318
    %577 = vmatprep.subr.mxu0 0.0
    %578 = vmatpush2.msra.mxu0 %v317
    %579 = vmatprep.subr.mxu0 0.0
    %580 = vmatpush2.msra.mxu0 %v316
    %581 = vmatprep.mubr.f32.mxu0 %v421
    %582 = vmatmul.mubr.f32.gmra.mxu0 %v419
    %v583 = vpop.f32.mrf.mxu0
    %v584 = vadd.f32 %v514, %v583
    %v585 = vpop.f32.mrf.mxu0
    %586 = vdwg.mxu0
    %587 = vmatprep.subr.mxu0 0.0
    %588 = vmatpush1.msra.mxu0 %v347
    %589 = vmatprep.subr.mxu0 0.0
    %590 = vmatpush1.msra.mxu0 %v346
    %591 = vmatprep.subr.mxu0 0.0
    %592 = vmatpush1.msra.mxu0 %v345
    %593 = vmatprep.subr.mxu0 0.0
    %594 = vmatpush1.msra.mxu0 %v344
    %595 = vmatprep.subr.mxu0 0.0
    %596 = vmatpush1.msra.mxu0 %v343
    %597 = vmatprep.subr.mxu0 0.0
    %598 = vmatpush1.msra.mxu0 %v342
    %599 = vmatprep.subr.mxu0 0.0
    %600 = vmatpush1.msra.mxu0 %v341
    %601 = vmatprep.subr.mxu0 0.0
    %602 = vmatpush1.msra.mxu0 %v340
    %603 = vmatprep.subr.mxu0 0.0
    %604 = vmatpush1.msra.mxu0 %v339
    %605 = vmatprep.subr.mxu0 0.0
    %606 = vmatpush1.msra.mxu0 %v338
    %607 = vmatprep.subr.mxu0 0.0
    %608 = vmatpush1.msra.mxu0 %v337
    %609 = vmatprep.subr.mxu0 0.0
    %610 = vmatpush1.msra.mxu0 %v336
    %611 = vmatprep.subr.mxu0 0.0
    %612 = vmatpush1.msra.mxu0 %v335
    %613 = vmatprep.subr.mxu0 0.0
    %614 = vmatpush1.msra.mxu0 %v334
    %615 = vmatprep.subr.mxu0 0.0
    %616 = vmatpush1.msra.mxu0 %v333
    %617 = vmatprep.subr.mxu0 0.0
    %618 = vmatpush1.msra.mxu0 %v332
    %619 = vmatprep.subr.mxu0 0.0
    %620 = vmatpush2.msra.mxu0 %v363
    %621 = vmatprep.subr.mxu0 0.0
    %622 = vmatpush2.msra.mxu0 %v362
    %623 = vmatprep.subr.mxu0 0.0
    %624 = vmatpush2.msra.mxu0 %v361
    %625 = vmatprep.subr.mxu0 0.0
    %626 = vmatpush2.msra.mxu0 %v360
    %627 = vmatprep.subr.mxu0 0.0
    %628 = vmatpush2.msra.mxu0 %v359
    %629 = vmatprep.subr.mxu0 0.0
    %630 = vmatpush2.msra.mxu0 %v358
    %631 = vmatprep.subr.mxu0 0.0
    %632 = vmatpush2.msra.mxu0 %v357
    %633 = vmatprep.subr.mxu0 0.0
    %634 = vmatpush2.msra.mxu0 %v356
    %635 = vmatprep.subr.mxu0 0.0
    %636 = vmatpush2.msra.mxu0 %v355
    %637 = vmatprep.subr.mxu0 0.0
    %638 = vmatpush2.msra.mxu0 %v354
    %639 = vmatprep.subr.mxu0 0.0
    %640 = vmatpush2.msra.mxu0 %v353
    %641 = vmatprep.subr.mxu0 0.0
    %642 = vmatpush2.msra.mxu0 %v352
    %643 = vmatprep.subr.mxu0 0.0
    %644 = vmatpush2.msra.mxu0 %v351
    %645 = vmatprep.subr.mxu0 0.0
    %646 = vmatpush2.msra.mxu0 %v350
    %647 = vmatprep.subr.mxu0 0.0
    %648 = vmatpush2.msra.mxu0 %v349
    %649 = vmatprep.subr.mxu0 0.0
    %650 = vmatpush2.msra.mxu0 %v348
    %651 = vmatprep.mubr.f32.mxu0 %v437
    %652 = vmatmul.mubr.f32.gmra.mxu0 %v429
    %v653 = vpop.f32.mrf.mxu0
    %v654 = vadd.f32 %v584, %v653
    %v655 = vpop.f32.mrf.mxu0
    %656 = vdwg.mxu0
    %657 = vmatprep.subr.mxu0 0.0
    %658 = vmatpush1.msra.mxu0 %v379
    %659 = vmatprep.subr.mxu0 0.0
    %660 = vmatpush1.msra.mxu0 %v378
    %661 = vmatprep.subr.mxu0 0.0
    %662 = vmatpush1.msra.mxu0 %v377
    %663 = vmatprep.subr.mxu0 0.0
    %664 = vmatpush1.msra.mxu0 %v376
    %665 = vmatprep.subr.mxu0 0.0
    %666 = vmatpush1.msra.mxu0 %v375
    %667 = vmatprep.subr.mxu0 0.0
    %668 = vmatpush1.msra.mxu0 %v374
    %669 = vmatprep.subr.mxu0 0.0
    %670 = vmatpush1.msra.mxu0 %v373
    %671 = vmatprep.subr.mxu0 0.0
    %672 = vmatpush1.msra.mxu0 %v372
    %673 = vmatprep.subr.mxu0 0.0
    %674 = vmatpush1.msra.mxu0 %v371
    %675 = vmatprep.subr.mxu0 0.0
    %676 = vmatpush1.msra.mxu0 %v370
    %677 = vmatprep.subr.mxu0 0.0
    %678 = vmatpush1.msra.mxu0 %v369
    %679 = vmatprep.subr.mxu0 0.0
    %680 = vmatpush1.msra.mxu0 %v368
    %681 = vmatprep.subr.mxu0 0.0
    %682 = vmatpush1.msra.mxu0 %v367
    %683 = vmatprep.subr.mxu0 0.0
    %684 = vmatpush1.msra.mxu0 %v366
    %685 = vmatprep.subr.mxu0 0.0
    %686 = vmatpush1.msra.mxu0 %v365
    %687 = vmatprep.subr.mxu0 0.0
    %688 = vmatpush1.msra.mxu0 %v364
    %689 = vmatprep.subr.mxu0 0.0
    %690 = vmatpush2.msra.mxu0 %v395
    %691 = vmatprep.subr.mxu0 0.0
    %692 = vmatpush2.msra.mxu0 %v394
    %693 = vmatprep.subr.mxu0 0.0
    %694 = vmatpush2.msra.mxu0 %v393
    %695 = vmatprep.subr.mxu0 0.0
    %696 = vmatpush2.msra.mxu0 %v392
    %697 = vmatprep.subr.mxu0 0.0
    %698 = vmatpush2.msra.mxu0 %v391
    %699 = vmatprep.subr.mxu0 0.0
    %700 = vmatpush2.msra.mxu0 %v390
    %701 = vmatprep.subr.mxu0 0.0
    %702 = vmatpush2.msra.mxu0 %v389
    %703 = vmatprep.subr.mxu0 0.0
    %704 = vmatpush2.msra.mxu0 %v388
    %705 = vmatprep.subr.mxu0 0.0
    %706 = vmatpush2.msra.mxu0 %v387
    %707 = vmatprep.subr.mxu0 0.0
    %708 = vmatpush2.msra.mxu0 %v386
    %709 = vmatprep.subr.mxu0 0.0
    %710 = vmatpush2.msra.mxu0 %v385
    %711 = vmatprep.subr.mxu0 0.0
    %712 = vmatpush2.msra.mxu0 %v384
    %713 = vmatprep.subr.mxu0 0.0
    %714 = vmatpush2.msra.mxu0 %v383
    %715 = vmatprep.subr.mxu0 0.0
    %716 = vmatpush2.msra.mxu0 %v382
    %717 = vmatprep.subr.mxu0 0.0
    %718 = vmatpush2.msra.mxu0 %v381
    %719 = vmatprep.subr.mxu0 0.0
    %720 = vmatpush2.msra.mxu0 %v380
    %721 = vmatprep.mubr.f32.mxu0 %v438
    %722 = vmatmul.mubr.f32.gmra.mxu0 %v436
    %v723 = vpop.f32.mrf.mxu0
    %v724 = vadd.f32 %v654, %v723
    %v725 = vpop.f32.mrf.mxu0
    %726 = vdwg.mxu0
    %vm727 = vcmp.gt.f32.partialorder %v724, 0.0
    %v728 = vsel %vm727, 1, 0
    %v729 = vcvt.s32.f32 %v728
    %v730 = vld [vmem:[%s4] sm:$0xff]
    %v731 = vld [vmem:[%s4 + $0x8] sm:$0xff]
    %v732 = vld [vmem:[%s4 + $0x10] sm:$0xff]
    %v733 = vld [vmem:[%s4 + $0x18] sm:$0xff]
    %vm734 = vcmask 261120
    %v736 = vsel %vm734, %v729, 0
    %738 = vmatprep.subr.mxu0 0.0
    %739 = vmatpush1.msra.mxu0 0.0
    %740 = vmatprep.subr.mxu0 0.0
    %741 = vmatpush1.msra.mxu0 0.0
    %742 = vmatprep.subr.mxu0 0.0
    %743 = vmatpush1.msra.mxu0 0.0
    %744 = vmatprep.subr.mxu0 0.0
    %745 = vmatpush1.msra.mxu0 0.0
    %746 = vmatprep.subr.mxu0 0.0
    %747 = vmatpush1.msra.mxu0 0.0
    %748 = vmatprep.subr.mxu0 0.0
    %749 = vmatpush1.msra.mxu0 0.0
    %750 = vmatprep.subr.mxu0 0.0
    %751 = vmatpush1.msra.mxu0 0.0
    %752 = vmatprep.subr.mxu0 0.0
    %753 = vmatpush1.msra.mxu0 0.0
    %754 = vmatprep.subr.mxu0 0.0
    %755 = vmatpush1.msra.mxu0 0.0
    %756 = vmatprep.subr.mxu0 0.0
    %757 = vmatpush1.msra.mxu0 0.0
    %758 = vmatprep.subr.mxu0 0.0
    %759 = vmatpush1.msra.mxu0 0.0
    %760 = vmatprep.subr.mxu0 0.0
    %761 = vmatpush1.msra.mxu0 0.0
    %762 = vmatprep.subr.mxu0 0.0
    %763 = vmatpush1.msra.mxu0 %v733
    %764 = vmatprep.subr.mxu0 0.0
    %765 = vmatpush1.msra.mxu0 %v732
    %766 = vmatprep.subr.mxu0 0.0
    %767 = vmatpush1.msra.mxu0 %v731
    %768 = vmatprep.subr.mxu0 0.0
    %769 = vmatpush1.msra.mxu0 %v730
    %770 = vmatprep.subr.mxu0 0.0
    %771 = vmatpush2.msra.mxu0 0.0
    %772 = vmatprep.subr.mxu0 0.0
    %773 = vmatpush2.msra.mxu0 0.0
    %774 = vmatprep.subr.mxu0 0.0
    %775 = vmatpush2.msra.mxu0 0.0
    %776 = vmatprep.subr.mxu0 0.0
    %777 = vmatpush2.msra.mxu0 0.0
    %778 = vmatprep.subr.mxu0 0.0
    %779 = vmatpush2.msra.mxu0 0.0
    %780 = vmatprep.subr.mxu0 0.0
    %781 = vmatpush2.msra.mxu0 0.0
    %782 = vmatprep.subr.mxu0 0.0
    %783 = vmatpush2.msra.mxu0 0.0
    %784 = vmatprep.subr.mxu0 0.0
    %785 = vmatpush2.msra.mxu0 0.0
    %786 = vmatprep.subr.mxu0 0.0
    %787 = vmatpush2.msra.mxu0 0.0
    %788 = vmatprep.subr.mxu0 0.0
    %789 = vmatpush2.msra.mxu0 0.0
    %790 = vmatprep.subr.mxu0 0.0
    %791 = vmatpush2.msra.mxu0 0.0
    %792 = vmatprep.subr.mxu0 0.0
    %793 = vmatpush2.msra.mxu0 0.0
    %794 = vmatprep.subr.mxu0 0.0
    %795 = vmatpush2.msra.mxu0 0.0
    %796 = vmatprep.subr.mxu0 0.0
    %797 = vmatpush2.msra.mxu0 0.0
    %798 = vmatprep.subr.mxu0 0.0
    %799 = vmatpush2.msra.mxu0 0.0
    %800 = vmatprep.subr.mxu0 0.0
    %801 = vmatpush2.msra.mxu0 0.0
    %802 = vmatprep.mubr.f32.mxu0 0.0
    %803 = vmatmul.mubr.f32.gmra.mxu0 %v736
    %v804 = vpop.f32.mrf.mxu0
    %v805 = vadd.f32 0.0, %v804
    %v806 = vpop.f32.mrf.mxu0
    %807 = vdwg.mxu0
    %v808 = vmul.f32 %v805, %v729
    %vm809 = vcmask 254976
    %v810 = vsel %vm809, %v808, 0.0
    %811 = vadd.xlane.f32.xlu0 %v810
    %v812 = vpop.xlane.xlu0 %811
    %v813 = vrsqrt.pop %v812
    %v814 = vmul.f32 %v812, %v813
    %vm815 = vcmp.eq.f32.partialorder %v812, inf
    %v816 = vsel %vm815, %v812, %v814
    %vm817 = vcmp.eq.f32.partialorder %v812, 0.0
    %v818 = vand.u32 %v812, 2147483648
    %v819 = vsel %vm817, %v818, %v816
    %v820 = vsub.f32 %v819, 1.0
    %v821 = vmul.f32 %v820, %v820
    %vm822 = vcmask 1041408
    %v823 = vsel %vm822, %v821, 0.0
    %v824 = vrot.slane %v823, 4
    %v825 = vadd.f32 %v823, %v824
    %v826 = vrot.slane %v825, 2
    %v827 = vadd.f32 %v825, %v826
    %v828 = vrot.slane %v827, 1
    %v829 = vadd.f32 %v827, %v828
    %v830 = vld [vmem:[#allocation2] sm:$0x1]
    %v831 = vmul.f32 %v829, 0.5
    %v832 = vadd.f32 %v830, %v831
    %vm833 = vcmask 0
    %834 = vst.msk [vmem:[#allocation2] sm:$0x1] %vm833, %v832
    // Predicated region
    $region30: #{tpu_custom_call.1} parent=1 // pred_check
      _
    $region31: #{tpu_custom_call.1} parent=1 // pred_check_branch
      %836 = sbr.rel (0) target = $region33
    $region32: #{tpu_custom_call.1} parent=1 // pred_region
      %s838 = ssub.s32 16, 16
      %839 = vsyncadd [#allocation3], %s838
      %s841 = sshll.u32 [#allocation2], 4
      %s842 = int_to_ptr.vmem [resolvable:$true] %s841
      %844 = dma.vmem_to_hbm [thread:$0]  %s842, 16, %s6, [#allocation3]
    $region33: #{tpu_custom_call.1} parent=1 // pred_fallthru
      _
    // Predicated region
    $region34: #{tpu_custom_call.1} parent=1 // pred_check
      _
    $region35: #{tpu_custom_call.1} parent=1 // pred_check_branch
      %846 = sbr.rel (0) target = $region37
    $region36: #{tpu_custom_call.1} parent=1 // pred_region
      %847 = dma.done [#allocation3], 16
    $region37: #{tpu_custom_call.1} parent=1 // pred_fallthru
      _
    %848 = vsyncpa [#allocation3], 1

</llo_original>
